<compile_context>
chip_gen: v7x
topology: tpu7x:2x2x1
jax: 0.10.0
libtpu: 0.0.40
codegen_flags: <defaults>
</compile_context>

<pallas_src>
import jax
import jax.numpy as jnp
import numpy as np
from jax.experimental import pallas as pl
from jax.experimental.pallas import tpu as pltpu


_VMEM_LIMIT_BYTES = 48 * 1024 * 1024     # raised scoped-VMEM limit (v5e default is 16 MiB)
_VMEM_BLOCK_BUDGET = 28 * 1024 * 1024    # target double-buffered working set (<~60% of limit)


def _dup_lanes(a_f32, dup_bf16):
    """Lane duplication: out[:, 2c] = out[:, 2c+1] = a[:, c].

    Done as two bf16 MXU passes against a 0/1 duplication matrix (hi/lo split
    keeps ~16 mantissa bits -> relative error ~2^-16, well below tolerance).
    The MXU is idle in this memory-bound kernel, so this rides a free unit.
    """
    hi = a_f32.astype(jnp.bfloat16)
    lo = (a_f32 - hi.astype(jnp.float32)).astype(jnp.bfloat16)
    out = jnp.dot(hi, dup_bf16, preferred_element_type=jnp.float32)
    out = out + jnp.dot(lo, dup_bf16, preferred_element_type=jnp.float32)
    return out


def att_module4_kernel(x_ref, r_ref, w1t_ref, b1_ref, w23t_ref, b23_ref,
                       dup_ref, out_ref):
    x = x_ref[...].astype(jnp.float32)       # (nb, C) original input (NCHW, H=W=1)
    r = r_ref[...].astype(jnp.float32)       # (nb, C) residual
    v = x + r                                # re-assigned `x` in the forward

    # conv1 (1x1) with eval-mode BN folded in: (nb, C) @ (C, MIP) + b1'
    t = jnp.dot(v, w1t_ref[...], preferred_element_type=jnp.float32) + b1_ref[...]
    # h_swish: t * relu6(t + 3) / 6
    t = t * jnp.clip(t + 3.0, 0.0, 6.0) * (1.0 / 6.0)

    # fused conv2|conv3 with *interleaved* columns (h0,w0,h1,w1,...):
    s = jnp.dot(t, w23t_ref[...], preferred_element_type=jnp.float32) + b23_ref[...]
    wei = jax.nn.sigmoid(s)                  # (nb, 2*OUP) interleaved attention weights

    dup = dup_ref[...]                       # (C, 2*OUP) bf16 0/1 duplication matrix
    x2 = _dup_lanes(x, dup)                  # x[:, c] -> lanes 2c and 2c+1
    r2 = _dup_lanes(r, dup)

    # xo = 2*(x+res)*wei + 2*res*(1-wei) == 2*(res + wei*x)
    out_ref[...] = (2.0 * (r2 + wei * x2)).astype(out_ref.dtype)


def _pick_batch_block(n, c, oup, in_itemsize, out_itemsize):
    """Batch block sized from C and the VMEM budget (multiple of 8 sublanes)."""
    # Streaming VMEM per batch row, double buffered: x + r in, (2*OUP) out.
    per_row = 2 * (2 * c * in_itemsize + 2 * oup * out_itemsize)
    # Non-streaming refs: conv weights are tiny; the bf16 duplication matrix
    # dominates (counted double buffered as well).
    const_bytes = 2 * (c * 2 * oup * 2)
    budget = _VMEM_BLOCK_BUDGET - const_bytes
    nb = max(8, min(1024, budget // per_row))
    nb = (nb // 8) * 8
    if n >= 16:
        # v7x megacore: keep >= 2 grid steps so the "parallel" batch axis can
        # be sharded across both TensorCores (harmless on 1-TC v5e/v6e).
        half = (((n + 1) // 2) + 7) // 8 * 8
        nb = min(nb, half)
    if nb >= n:
        nb = n                               # full-extent block, no padding
    return nb


def att_module4(x, residual, params):
    n, c, h, w = x.shape
    if h != 1 or w != 1:
        raise ValueError(
            "Att_Module4.forward only runs for 1x1 spatial inputs "
            f"(torch.cat / broadcast constraints); got H={h}, W={w}")
    if residual.shape != x.shape:
        raise ValueError("residual must have the same shape as x")
    w1, b1, bn_scale, bn_bias, w2, b2, w3, b3 = params
    oup = w2.shape[0]
    mip = w1.shape[0]
    if oup != c:
        raise ValueError("the final `2*x*wei` broadcast requires oup == inp")

    f32 = jnp.float32
    # Fold eval-mode BN into conv1 (one-time, tiny, wrapper-side).
    w1t = (w1.astype(f32) * bn_scale.astype(f32)[:, None]).T            # (C, MIP)
    b1f = (b1.astype(f32) * bn_scale.astype(f32) + bn_bias.astype(f32))[None, :]
    # Fuse conv2/conv3 into one GEMM with interleaved columns so the kernel's
    # (N, 2*OUP) output reshapes to NCHW (N, OUP, 2, 1) with no data movement.
    w23t = jnp.stack([w2.astype(f32), w3.astype(f32)], axis=1).reshape(2 * oup, mip).T
    b23 = jnp.stack([b2.astype(f32), b3.astype(f32)], axis=1).reshape(1, 2 * oup)
    # 0/1 duplication matrix: dup[c, 2c] = dup[c, 2c+1] = 1 (exact in bf16).
    eye = jnp.eye(c, dtype=jnp.bfloat16)
    dup = jnp.stack([eye, eye], axis=2).reshape(c, 2 * c)

    # Lane-dense views: channels on the 128-lane axis.
    x2 = x.reshape(n, c)
    r2 = residual.reshape(n, c)

    nb = _pick_batch_block(n, c, oup, x2.dtype.itemsize, x.dtype.itemsize)
    grid = (pl.cdiv(n, nb),)

    def rep(shape):
        nd = len(shape)
        return pl.BlockSpec(shape, lambda i, _nd=nd: (0,) * _nd)

    out = pl.pallas_call(
        att_module4_kernel,
        out_shape=jax.ShapeDtypeStruct((n, 2 * oup), x.dtype),
        grid_spec=pltpu.PrefetchScalarGridSpec(
            num_scalar_prefetch=0,
            grid=grid,
            in_specs=[
                pl.BlockSpec((nb, c), lambda i: (i, 0)),
                pl.BlockSpec((nb, c), lambda i: (i, 0)),
                rep(w1t.shape), rep(b1f.shape),
                rep(w23t.shape), rep(b23.shape),
                rep(dup.shape),
            ],
            out_specs=pl.BlockSpec((nb, 2 * oup), lambda i: (i, 0)),
        ),
        compiler_params=pltpu.CompilerParams(
            dimension_semantics=("parallel",),
            vmem_limit_bytes=_VMEM_LIMIT_BYTES),
    )(x2, r2, w1t, b1f, w23t, b23, dup)

    # (N, 2*OUP) interleaved (h0,w0,h1,w1,...) -> (N, OUP, 2, 1):
    # pure row-major reshape, no transpose, no extra HBM pass.
    return out.reshape(n, oup, 2, 1)


def init_params(key, inp, oup, groups=32):
    mip = int(inp // groups)                 # exactly as in Att_Module4.__init__
    assert mip >= 1, "inp // groups must be >= 1"
    ks = jax.random.split(key, 10)
    w1 = 0.2 * jax.random.normal(ks[0], (mip, inp), jnp.float32)
    b1 = 0.1 * jax.random.normal(ks[1], (mip,), jnp.float32)
    gamma = 1.0 + 0.1 * jax.random.normal(ks[2], (mip,), jnp.float32)
    beta = 0.1 * jax.random.normal(ks[3], (mip,), jnp.float32)
    running_mean = 0.1 * jax.random.normal(ks[4], (mip,), jnp.float32)
    running_var = 1.0 + 0.1 * jnp.abs(jax.random.normal(ks[5], (mip,), jnp.float32))
    eps = 1e-5
    bn_scale = gamma / jnp.sqrt(running_var + eps)
    bn_bias = beta - running_mean * bn_scale
    w2 = 0.2 * jax.random.normal(ks[6], (oup, mip), jnp.float32)
    b2 = 0.1 * jax.random.normal(ks[7], (oup,), jnp.float32)
    w3 = 0.2 * jax.random.normal(ks[8], (oup, mip), jnp.float32)
    b3 = 0.1 * jax.random.normal(ks[9], (oup,), jnp.float32)
    return (w1, b1, bn_scale, bn_bias, w2, b2, w3, b3)


def reference(x, residual, params):
    """Pure-JAX mirror of Att_Module4.forward (eval-mode BatchNorm)."""
    w1, b1, bn_scale, bn_bias, w2, b2, w3, b3 = params
    xs = x + residual                                      # forward reassigns x
    n, c, h, w = xs.shape                                  # requires h == w == 1
    # split/cat along dims 2 and 3 are identities
    x_h = jnp.mean(xs, axis=(2, 3), keepdims=True)         # AdaptiveAvgPool2d(1)
    x_w = xs
    y = jnp.concatenate([x_h, x_w], axis=2)                # (n, c, 1+h, w)
    y = jnp.einsum('mc,nchw->nmhw', w1, y, precision='highest') + b1[None, :, None, None]
    y = y * bn_scale[None, :, None, None] + bn_bias[None, :, None, None]
    y = y * jnp.clip(y + 3.0, 0.0, 6.0) / 6.0              # h_swish
    a_h, a_w = y[:, :, :h, :], y[:, :, h:, :]
    a_w = jnp.transpose(a_w, (0, 1, 3, 2))                 # permute(0, 1, 3, 2)
    xh = jnp.einsum('om,nmhw->nohw', w2, a_h, precision='highest') + b2[None, :, None, None]
    xw = jnp.einsum('om,nmhw->nohw', w3, a_w, precision='highest') + b3[None, :, None, None]
    oup = w2.shape[0]
    xh = jnp.broadcast_to(xh, (n, oup, h, w))
    xw = jnp.broadcast_to(xw, (n, oup, h, w))
    wei = jax.nn.sigmoid(jnp.concatenate([xh, xw], axis=2))  # (n, oup, 2h, w)
    return 2.0 * xs * wei + 2.0 * residual * (1.0 - wei)


if __name__ == "__main__":
    # The forward implies 1x1 spatial inputs; groups=32 (default) -> MIP = C // 32.
    # N=64 exercises a multi-block grid (nb=32, grid=(2,)) on the "parallel" axis.
    N, C = 64, 128
    key = jax.random.PRNGKey(0)
    k_x, k_r, k_p = jax.random.split(key, 3)
    x = jax.random.normal(k_x, (N, C, 1, 1), jnp.float32)
    residual = jax.random.normal(k_r, (N, C, 1, 1), jnp.float32)
    params = init_params(k_p, inp=C, oup=C, groups=32)

    out = jax.block_until_ready(att_module4(x, residual, params))
    ref = jax.block_until_ready(reference(x, residual, params))

    assert out.shape == ref.shape == (N, C, 2, 1)
    np.testing.assert_allclose(np.asarray(out), np.asarray(ref), atol=1e-3, rtol=1e-3)

    print("KERNEL_OK")
</pallas_src>

<mosaic_0001>
module attributes {stable_mosaic.version = 11 : i64} {
  func.func @att_module4_kernel(%arg0: i32, %arg1: memref<32x128xf32, #tpu.memory_space<vmem>>, %arg2: memref<32x128xf32, #tpu.memory_space<vmem>>, %arg3: memref<128x4xf32, #tpu.memory_space<vmem>>, %arg4: memref<1x4xf32, #tpu.memory_space<vmem>>, %arg5: memref<4x256xf32, #tpu.memory_space<vmem>>, %arg6: memref<1x256xf32, #tpu.memory_space<vmem>>, %arg7: memref<128x256xbf16, #tpu.memory_space<vmem>>, %arg8: memref<32x256xf32, #tpu.memory_space<vmem>>) attributes {dimension_semantics = [#tpu.dimension_semantics<parallel>], iteration_bounds = array<i64: 2>, scalar_prefetch = 0 : i64, scratch_operands = 0 : i64, tpu.core_type = #tpu.core_type<tc>, window_params = [{transform_indices = @transform_0, window_bounds = array<i64: 32, 128>}, {transform_indices = @transform_1, window_bounds = array<i64: 32, 128>}, {pipeline_mode = #tpu.pipeline_mode<synchronous>, transform_indices = @transform_2, window_bounds = array<i64: 128, 4>}, {pipeline_mode = #tpu.pipeline_mode<synchronous>, transform_indices = @transform_3, window_bounds = array<i64: 1, 4>}, {pipeline_mode = #tpu.pipeline_mode<synchronous>, transform_indices = @transform_4, window_bounds = array<i64: 4, 256>}, {pipeline_mode = #tpu.pipeline_mode<synchronous>, transform_indices = @transform_5, window_bounds = array<i64: 1, 256>}, {pipeline_mode = #tpu.pipeline_mode<synchronous>, transform_indices = @transform_6, window_bounds = array<i64: 128, 256>}, {transform_indices = @transform_7, window_bounds = array<i64: 32, 256>}]} {
    %c0 = arith.constant 0 : index
    %c0_0 = arith.constant 0 : index
    %0 = vector.load %arg1[%c0, %c0_0] : memref<32x128xf32, #tpu.memory_space<vmem>>, vector<32x128xf32>
    %c0_1 = arith.constant 0 : index
    %c0_2 = arith.constant 0 : index
    %1 = vector.load %arg2[%c0_1, %c0_2] : memref<32x128xf32, #tpu.memory_space<vmem>>, vector<32x128xf32>
    %2 = arith.addf %0, %1 : vector<32x128xf32>
    %c0_3 = arith.constant 0 : index
    %c0_4 = arith.constant 0 : index
    %3 = vector.load %arg3[%c0_3, %c0_4] : memref<128x4xf32, #tpu.memory_space<vmem>>, vector<128x4xf32>
    %cst = arith.constant dense<0.000000e+00> : vector<32x4xf32>
    %4 = tpu.matmul %2, %3, %cst {dimension_numbers = #tpu.dot_dimension_numbers<[1], [0], [0], [1], [0, 0, 1, 1], [], []>} : vector<32x128xf32>, vector<128x4xf32>, vector<32x4xf32> -> vector<32x4xf32>
    %c0_5 = arith.constant 0 : index
    %c0_6 = arith.constant 0 : index
    %5 = vector.load %arg4[%c0_5, %c0_6] : memref<1x4xf32, #tpu.memory_space<vmem>>, vector<1x4xf32>
    %6 = vector.broadcast %5 : vector<1x4xf32> to vector<32x4xf32>
    %7 = arith.addf %4, %6 : vector<32x4xf32>
    %cst_7 = arith.constant 3.000000e+00 : f32
    %8 = vector.broadcast %cst_7 : f32 to vector<32x4xf32>
    %9 = arith.addf %7, %8 : vector<32x4xf32>
    %cst_8 = arith.constant 0.000000e+00 : f32
    %cst_9 = arith.constant 6.000000e+00 : f32
    %10 = vector.broadcast %cst_8 : f32 to vector<32x4xf32>
    %11 = arith.maximumf %10, %9 : vector<32x4xf32>
    %12 = vector.broadcast %cst_9 : f32 to vector<32x4xf32>
    %13 = arith.minimumf %12, %11 : vector<32x4xf32>
    %14 = arith.mulf %7, %13 : vector<32x4xf32>
    %cst_10 = arith.constant 0.166666672 : f32
    %15 = vector.broadcast %cst_10 : f32 to vector<32x4xf32>
    %16 = arith.mulf %14, %15 : vector<32x4xf32>
    %c0_11 = arith.constant 0 : index
    %c0_12 = arith.constant 0 : index
    %17 = vector.load %arg5[%c0_11, %c0_12] : memref<4x256xf32, #tpu.memory_space<vmem>>, vector<4x256xf32>
    %cst_13 = arith.constant dense<0.000000e+00> : vector<32x256xf32>
    %18 = tpu.matmul %16, %17, %cst_13 {dimension_numbers = #tpu.dot_dimension_numbers<[1], [0], [0], [1], [0, 0, 1, 1], [], []>} : vector<32x4xf32>, vector<4x256xf32>, vector<32x256xf32> -> vector<32x256xf32>
    %c0_14 = arith.constant 0 : index
    %c0_15 = arith.constant 0 : index
    %19 = vector.load %arg6[%c0_14, %c0_15] : memref<1x256xf32, #tpu.memory_space<vmem>>, vector<1x256xf32>
    %20 = vector.broadcast %19 : vector<1x256xf32> to vector<32x256xf32>
    %21 = arith.addf %18, %20 : vector<32x256xf32>
    %22 = arith.negf %21 : vector<32x256xf32>
    %23 = math.exp %22 : vector<32x256xf32>
    %cst_16 = arith.constant 1.000000e+00 : f32
    %24 = vector.broadcast %cst_16 : f32 to vector<32x256xf32>
    %25 = arith.addf %24, %23 : vector<32x256xf32>
    %26 = arith.divf %24, %25 : vector<32x256xf32>
    %c0_17 = arith.constant 0 : index
    %c0_18 = arith.constant 0 : index
    %27 = vector.load %arg7[%c0_17, %c0_18] : memref<128x256xbf16, #tpu.memory_space<vmem>>, vector<128x256xbf16>
    %28 = arith.truncf %0 : vector<32x128xf32> to vector<32x128xbf16>
    %29 = arith.extf %28 : vector<32x128xbf16> to vector<32x128xf32>
    %30 = arith.subf %0, %29 : vector<32x128xf32>
    %31 = arith.truncf %30 : vector<32x128xf32> to vector<32x128xbf16>
    %cst_19 = arith.constant dense<0.000000e+00> : vector<32x256xf32>
    %32 = tpu.matmul %28, %27, %cst_19 {dimension_numbers = #tpu.dot_dimension_numbers<[1], [0], [0], [1], [0, 0, 1, 1], [], []>} : vector<32x128xbf16>, vector<128x256xbf16>, vector<32x256xf32> -> vector<32x256xf32>
    %cst_20 = arith.constant dense<0.000000e+00> : vector<32x256xf32>
    %33 = tpu.matmul %31, %27, %cst_20 {dimension_numbers = #tpu.dot_dimension_numbers<[1], [0], [0], [1], [0, 0, 1, 1], [], []>} : vector<32x128xbf16>, vector<128x256xbf16>, vector<32x256xf32> -> vector<32x256xf32>
    %34 = arith.addf %32, %33 : vector<32x256xf32>
    %35 = arith.truncf %1 : vector<32x128xf32> to vector<32x128xbf16>
    %36 = arith.extf %35 : vector<32x128xbf16> to vector<32x128xf32>
    %37 = arith.subf %1, %36 : vector<32x128xf32>
    %38 = arith.truncf %37 : vector<32x128xf32> to vector<32x128xbf16>
    %cst_21 = arith.constant dense<0.000000e+00> : vector<32x256xf32>
    %39 = tpu.matmul %35, %27, %cst_21 {dimension_numbers = #tpu.dot_dimension_numbers<[1], [0], [0], [1], [0, 0, 1, 1], [], []>} : vector<32x128xbf16>, vector<128x256xbf16>, vector<32x256xf32> -> vector<32x256xf32>
    %cst_22 = arith.constant dense<0.000000e+00> : vector<32x256xf32>
    %40 = tpu.matmul %38, %27, %cst_22 {dimension_numbers = #tpu.dot_dimension_numbers<[1], [0], [0], [1], [0, 0, 1, 1], [], []>} : vector<32x128xbf16>, vector<128x256xbf16>, vector<32x256xf32> -> vector<32x256xf32>
    %41 = arith.addf %39, %40 : vector<32x256xf32>
    %42 = arith.mulf %26, %34 : vector<32x256xf32>
    %43 = arith.addf %41, %42 : vector<32x256xf32>
    %cst_23 = arith.constant 2.000000e+00 : f32
    %44 = vector.broadcast %cst_23 : f32 to vector<32x256xf32>
    %45 = arith.mulf %44, %43 : vector<32x256xf32>
    %c0_24 = arith.constant 0 : index
    %c0_25 = arith.constant 0 : index
    %46 = vector.load %arg8[%c0_24, %c0_25] : memref<32x256xf32, #tpu.memory_space<vmem>>, vector<32x256xf32>
    tpu.vector_store %arg8[%c0_24, %c0_25], %45 {strides = array<i32>} : memref<32x256xf32, #tpu.memory_space<vmem>>, vector<32x256xf32>,
    return
  }
  func.func @transform_0(%arg0: i32) -> (i32, i32) {
    %c0_i32 = arith.constant 0 : i32
    %c0_i32_0 = arith.constant 0 : i32
    return %arg0, %c0_i32 : i32, i32
  }
  func.func @transform_1(%arg0: i32) -> (i32, i32) {
    %c0_i32 = arith.constant 0 : i32
    %c0_i32_0 = arith.constant 0 : i32
    return %arg0, %c0_i32 : i32, i32
  }
  func.func @transform_2(%arg0: i32) -> (i32, i32) {
    %c0_i32 = arith.constant 0 : i32
    %c0_i32_0 = arith.constant 0 : i32
    %c0_i32_1 = arith.constant 0 : i32
    return %c0_i32, %c0_i32_0 : i32, i32
  }
  func.func @transform_3(%arg0: i32) -> (i32, i32) {
    %c0_i32 = arith.constant 0 : i32
    %c0_i32_0 = arith.constant 0 : i32
    %c0_i32_1 = arith.constant 0 : i32
    return %c0_i32, %c0_i32_0 : i32, i32
  }
  func.func @transform_4(%arg0: i32) -> (i32, i32) {
    %c0_i32 = arith.constant 0 : i32
    %c0_i32_0 = arith.constant 0 : i32
    %c0_i32_1 = arith.constant 0 : i32
    return %c0_i32, %c0_i32_0 : i32, i32
  }
  func.func @transform_5(%arg0: i32) -> (i32, i32) {
    %c0_i32 = arith.constant 0 : i32
    %c0_i32_0 = arith.constant 0 : i32
    %c0_i32_1 = arith.constant 0 : i32
    return %c0_i32, %c0_i32_0 : i32, i32
  }
  func.func @transform_6(%arg0: i32) -> (i32, i32) {
    %c0_i32 = arith.constant 0 : i32
    %c0_i32_0 = arith.constant 0 : i32
    %c0_i32_1 = arith.constant 0 : i32
    return %c0_i32, %c0_i32_0 : i32, i32
  }
  func.func @transform_7(%arg0: i32) -> (i32, i32) {
    %c0_i32 = arith.constant 0 : i32
    %c0_i32_0 = arith.constant 0 : i32
    return %arg0, %c0_i32 : i32, i32
  }
}

</mosaic_0001>

<llo_original>
// kernel: tpu_custom_call.1
$region0: #{tpu_custom_call.1}
  #allocation0 [shape = 'u32[]', space=smem, size = 0x4, offset = 0x4, fixed_abs, tag = 'smem constant byte address 0x4 - core index']
  #allocation1 [shape = 'u32[144,128]{1,0:T(1,128)}', space=vmem, size = 0x12000, scoped, tag = 'internal scratch']
  %s0 = inlined_call_operand.hbm [shape: f32[64,128], index: 0, kind: input, shape index: {}]
  %s1 = inlined_call_operand.hbm [shape: f32[64,128], index: 1, kind: input, shape index: {}]
  %s2 = inlined_call_operand.vmem [shape: f32[128,4], index: 2, kind: input, shape index: {}]
  %s3 = inlined_call_operand.vmem [shape: f32[1,4], index: 3, kind: input, shape index: {}]
  %s4 = inlined_call_operand.vmem [shape: f32[4,256], index: 4, kind: input, shape index: {}]
  %s5 = inlined_call_operand.vmem [shape: f32[1,256], index: 5, kind: input, shape index: {}]
  %s6 = inlined_call_operand.vmem [shape: bf16[128,256], index: 6, kind: input, shape index: {}]
  %s7 = inlined_call_operand.hbm [shape: f32[64,256], index: 7, kind: output, shape index: {}]
  %s8 = sld [smem:[#allocation0]]
  $region69: #{tpu_custom_call.1} parent=0
    _
  %s10 = ssub.s32 1, %s8
  %s11 = scalar_select 0, %s10, %s8
  $region1: #{tpu_custom_call.1} parent=0
    #allocation2 [shape = 'u8[32768]{0}', space=vmem, size = 0x8000, scoped, tag = 'input window, operand 0']
    #allocation3 [shape = 's32[2]{0}', space=sflag, size = 0x8, scoped, tag = 'scoped memory for tpu_custom_call.1']
    #allocation4 [shape = 's32[2]{0}', space=sflag, size = 0x8, scoped, tag = 'scoped memory for tpu_custom_call.1']
    #allocation5 [shape = 'u8[32768]{0}', space=vmem, size = 0x8000, scoped, tag = 'input window, operand 1']
    #allocation6 [shape = 's32[2]{0}', space=sflag, size = 0x8, scoped, tag = 'scoped memory for tpu_custom_call.1']
    #allocation7 [shape = 'u8[65536]{0}', space=vmem, size = 0x10000, scoped, tag = 'output window, operand 0']
    %12 = vsyncpa [#allocation3], 0
    %s13 = scalar_lea.sflag [#allocation3], 1
    %14 = vsyncpa %s13, 0
    %15 = vsyncpa [#allocation6], 0
    %s16 = scalar_lea.sflag [#allocation6], 1
    %17 = vsyncpa %s16, 0
    %18 = vsyncpa [#allocation4], 0
    %s19 = scalar_lea.sflag [#allocation4], 1
    %20 = vsyncpa %s19, 0
    loop: start=0, step=1, limit=4
    $region2: #{tpu_custom_call.1} parent=1 // loop_pre_header
      _
    $region3: #{tpu_custom_call.1} parent=1 // loop_header
      %s22 = sphi 0, %s26
      %p23 = scmp.ge.s32.totalorder %s22, 4
      %s32 = sphi 0, %s34
      %s35 = sphi 0, %s32
      %s36 = sphi 0, %s35
      %s52 = sphi 0, %s36
      %s58 = sphi 0, %s60
      %s61 = sphi 0, %s58
      %s62 = sphi 0, %s61
      %s78 = sphi 0, %s62
      %s82 = sphi 0, %s82
      %s84 = sphi 0, %s82
      %s85 = sphi 0, %s84
      %s99 = sphi 0, %s85
      %s103 = sphi 0, %s103
      %s105 = sphi 0, %s103
      %s106 = sphi 0, %s105
      %s120 = sphi 0, %s106
      %s124 = sphi 0, %s124
      %s126 = sphi 0, %s124
      %s127 = sphi 0, %s126
      %s141 = sphi 0, %s127
      %s145 = sphi 0, %s145
      %s147 = sphi 0, %s145
      %s148 = sphi 0, %s147
      %s162 = sphi 0, %s148
      %s166 = sphi 0, %s166
      %s168 = sphi 0, %s166
      %s169 = sphi 0, %s168
      %s183 = sphi 0, %s169
      %s189 = sphi 0, %s191
      %s192 = sphi 0, %s189
      %s193 = sphi 0, %s192
      %s209 = sphi 0, %s193
    $region4: #{tpu_custom_call.1} parent=1 // loop_header_branch
      %25 = sbr.rel (%p23) target = $region8
    $region5: #{tpu_custom_call.1} parent=1 // loop_body
      %s27 = ssub.s32 %s22, 1
      %s28 = ssub.s32 %s22, 2
      %s29 = sadd.s32 %s22, 1
      %s30 = ssub.s32 %s22, %s29
      %p31 = scmp.eq.s32.totalorder %s30, 0
      %s33 = sadd.s32 %s32, 1
      %s34 = scalar_select %p31, %s32, %s33
      %p37 = pneg %p31
      %p38 = scmp.eq.s32.totalorder %s22, 1
      %p39 = por %p37, %p38
      %p40 = scmp.ne.s32.totalorder %s32, %s35
      %p41 = scmp.eq.s32.totalorder %s22, 0
      %p42 = por %p40, %p41
      %p43 = scmp.ne.s32.totalorder %s32, %s35
      %p44 = scmp.eq.s32.totalorder %s27, 1
      %p45 = por %p43, %p44
      %p46 = scmp.ne.s32.totalorder %s35, %s36
      %p47 = scmp.eq.s32.totalorder %s27, 0
      %p48 = por %p46, %p47
      %p49 = scmp.ne.s32.totalorder %s35, %s36
      %p50 = scmp.eq.s32.totalorder %s28, 1
      %p51 = por %p49, %p50
      %p53 = scmp.ne.s32.totalorder %s36, %s52
      %p54 = scmp.eq.s32.totalorder %s28, 0
      %p55 = por %p53, %p54
      %s56 = ssub.s32 %s22, %s29
      %p57 = scmp.eq.s32.totalorder %s56, 0
      %s59 = sadd.s32 %s58, 1
      %s60 = scalar_select %p57, %s58, %s59
      %p63 = pneg %p57
      %p64 = scmp.eq.s32.totalorder %s22, 1
      %p65 = por %p63, %p64
      %p66 = scmp.ne.s32.totalorder %s58, %s61
      %p67 = scmp.eq.s32.totalorder %s22, 0
      %p68 = por %p66, %p67
      %p69 = scmp.ne.s32.totalorder %s58, %s61
      %p70 = scmp.eq.s32.totalorder %s27, 1
      %p71 = por %p69, %p70
      %p72 = scmp.ne.s32.totalorder %s61, %s62
      %p73 = scmp.eq.s32.totalorder %s27, 0
      %p74 = por %p72, %p73
      %p75 = scmp.ne.s32.totalorder %s61, %s62
      %p76 = scmp.eq.s32.totalorder %s28, 1
      %p77 = por %p75, %p76
      %p79 = scmp.ne.s32.totalorder %s62, %s78
      %p80 = scmp.eq.s32.totalorder %s28, 0
      %p81 = por %p79, %p80
      %s83 = sadd.s32 %s82, 1
      %p86 = scmp.eq.s32.totalorder %s22, 1
      %p87 = scmp.ne.s32.totalorder %s82, %s84
      %p88 = scmp.eq.s32.totalorder %s22, 0
      %p89 = por %p87, %p88
      %p90 = scmp.ne.s32.totalorder %s82, %s84
      %p91 = scmp.eq.s32.totalorder %s27, 1
      %p92 = por %p90, %p91
      %p93 = scmp.ne.s32.totalorder %s84, %s85
      %p94 = scmp.eq.s32.totalorder %s27, 0
      %p95 = por %p93, %p94
      %p96 = scmp.ne.s32.totalorder %s84, %s85
      %p97 = scmp.eq.s32.totalorder %s28, 1
      %p98 = por %p96, %p97
      %p100 = scmp.ne.s32.totalorder %s85, %s99
      %p101 = scmp.eq.s32.totalorder %s28, 0
      %p102 = por %p100, %p101
      %s104 = sadd.s32 %s103, 1
      %p107 = scmp.eq.s32.totalorder %s22, 1
      %p108 = scmp.ne.s32.totalorder %s103, %s105
      %p109 = scmp.eq.s32.totalorder %s22, 0
      %p110 = por %p108, %p109
      %p111 = scmp.ne.s32.totalorder %s103, %s105
      %p112 = scmp.eq.s32.totalorder %s27, 1
      %p113 = por %p111, %p112
      %p114 = scmp.ne.s32.totalorder %s105, %s106
      %p115 = scmp.eq.s32.totalorder %s27, 0
      %p116 = por %p114, %p115
      %p117 = scmp.ne.s32.totalorder %s105, %s106
      %p118 = scmp.eq.s32.totalorder %s28, 1
      %p119 = por %p117, %p118
      %p121 = scmp.ne.s32.totalorder %s106, %s120
      %p122 = scmp.eq.s32.totalorder %s28, 0
      %p123 = por %p121, %p122
      %s125 = sadd.s32 %s124, 1
      %p128 = scmp.eq.s32.totalorder %s22, 1
      %p129 = scmp.ne.s32.totalorder %s124, %s126
      %p130 = scmp.eq.s32.totalorder %s22, 0
      %p131 = por %p129, %p130
      %p132 = scmp.ne.s32.totalorder %s124, %s126
      %p133 = scmp.eq.s32.totalorder %s27, 1
      %p134 = por %p132, %p133
      %p135 = scmp.ne.s32.totalorder %s126, %s127
      %p136 = scmp.eq.s32.totalorder %s27, 0
      %p137 = por %p135, %p136
      %p138 = scmp.ne.s32.totalorder %s126, %s127
      %p139 = scmp.eq.s32.totalorder %s28, 1
      %p140 = por %p138, %p139
      %p142 = scmp.ne.s32.totalorder %s127, %s141
      %p143 = scmp.eq.s32.totalorder %s28, 0
      %p144 = por %p142, %p143
      %s146 = sadd.s32 %s145, 1
      %p149 = scmp.eq.s32.totalorder %s22, 1
      %p150 = scmp.ne.s32.totalorder %s145, %s147
      %p151 = scmp.eq.s32.totalorder %s22, 0
      %p152 = por %p150, %p151
      %p153 = scmp.ne.s32.totalorder %s145, %s147
      %p154 = scmp.eq.s32.totalorder %s27, 1
      %p155 = por %p153, %p154
      %p156 = scmp.ne.s32.totalorder %s147, %s148
      %p157 = scmp.eq.s32.totalorder %s27, 0
      %p158 = por %p156, %p157
      %p159 = scmp.ne.s32.totalorder %s147, %s148
      %p160 = scmp.eq.s32.totalorder %s28, 1
      %p161 = por %p159, %p160
      %p163 = scmp.ne.s32.totalorder %s148, %s162
      %p164 = scmp.eq.s32.totalorder %s28, 0
      %p165 = por %p163, %p164
      %s167 = sadd.s32 %s166, 1
      %p170 = scmp.eq.s32.totalorder %s22, 1
      %p171 = scmp.ne.s32.totalorder %s166, %s168
      %p172 = scmp.eq.s32.totalorder %s22, 0
      %p173 = por %p171, %p172
      %p174 = scmp.ne.s32.totalorder %s166, %s168
      %p175 = scmp.eq.s32.totalorder %s27, 1
      %p176 = por %p174, %p175
      %p177 = scmp.ne.s32.totalorder %s168, %s169
      %p178 = scmp.eq.s32.totalorder %s27, 0
      %p179 = por %p177, %p178
      %p180 = scmp.ne.s32.totalorder %s168, %s169
      %p181 = scmp.eq.s32.totalorder %s28, 1
      %p182 = por %p180, %p181
      %p184 = scmp.ne.s32.totalorder %s169, %s183
      %p185 = scmp.eq.s32.totalorder %s28, 0
      %p186 = por %p184, %p185
      %s187 = ssub.s32 %s22, %s29
      %p188 = scmp.eq.s32.totalorder %s187, 0
      %s190 = sadd.s32 %s189, 1
      %s191 = scalar_select %p188, %s189, %s190
      %p194 = pneg %p188
      %p195 = scmp.eq.s32.totalorder %s22, 1
      %p196 = por %p194, %p195
      %p197 = scmp.ne.s32.totalorder %s189, %s192
      %p198 = scmp.eq.s32.totalorder %s22, 0
      %p199 = por %p197, %p198
      %p200 = scmp.ne.s32.totalorder %s189, %s192
      %p201 = scmp.eq.s32.totalorder %s27, 1
      %p202 = por %p200, %p201
      %p203 = scmp.ne.s32.totalorder %s192, %s193
      %p204 = scmp.eq.s32.totalorder %s27, 0
      %p205 = por %p203, %p204
      %p206 = scmp.ne.s32.totalorder %s192, %s193
      %p207 = scmp.eq.s32.totalorder %s28, 1
      %p208 = por %p206, %p207
      %p210 = scmp.ne.s32.totalorder %s193, %s209
      %p211 = scmp.eq.s32.totalorder %s28, 0
      %p212 = por %p210, %p211
      %p213 = scmp.le.s32.totalorder 1, %s22
      %p214 = scmp.lt.s32.totalorder %s22, 3
      %p215 = pnand %p213, %p214
      %p216 = pneg %p215
      // Predicated region
      $region9: #{tpu_custom_call.1} parent=5 // pred_check
        _
      $region10: #{tpu_custom_call.1} parent=5 // pred_check_branch
        %218 = sbr.rel (%p215) target = $region12
      $region11: #{tpu_custom_call.1} parent=5 // pred_region
        %s219 = ssub.s32 %s22, 1
        // Predicated region
        $region13: #{tpu_custom_call.1} parent=11 // pred_check
          %p220 = pneg %p95
        $region14: #{tpu_custom_call.1} parent=11 // pred_check_branch
          %222 = sbr.rel (%p220) target = $region16
        $region15: #{tpu_custom_call.1} parent=11 // pred_region
          _
        $region16: #{tpu_custom_call.1} parent=11 // pred_fallthru
          _
        // Predicated region
        $region17: #{tpu_custom_call.1} parent=11 // pred_check
          %p223 = pneg %p116
        $region18: #{tpu_custom_call.1} parent=11 // pred_check_branch
          %225 = sbr.rel (%p223) target = $region20
        $region19: #{tpu_custom_call.1} parent=11 // pred_region
          _
        $region20: #{tpu_custom_call.1} parent=11 // pred_fallthru
          _
        // Predicated region
        $region21: #{tpu_custom_call.1} parent=11 // pred_check
          %p226 = pneg %p137
        $region22: #{tpu_custom_call.1} parent=11 // pred_check_branch
          %228 = sbr.rel (%p226) target = $region24
        $region23: #{tpu_custom_call.1} parent=11 // pred_region
          _
        $region24: #{tpu_custom_call.1} parent=11 // pred_fallthru
          _
        // Predicated region
        $region25: #{tpu_custom_call.1} parent=11 // pred_check
          %p229 = pneg %p158
        $region26: #{tpu_custom_call.1} parent=11 // pred_check_branch
          %231 = sbr.rel (%p229) target = $region28
        $region27: #{tpu_custom_call.1} parent=11 // pred_region
          _
        $region28: #{tpu_custom_call.1} parent=11 // pred_fallthru
          _
        // Predicated region
        $region29: #{tpu_custom_call.1} parent=11 // pred_check
          %p232 = pneg %p179
        $region30: #{tpu_custom_call.1} parent=11 // pred_check_branch
          %234 = sbr.rel (%p232) target = $region32
        $region31: #{tpu_custom_call.1} parent=11 // pred_region
          _
        $region32: #{tpu_custom_call.1} parent=11 // pred_fallthru
          _
      $region12: #{tpu_custom_call.1} parent=5 // pred_fallthru
        _
      %p235 = scmp.lt.s32.totalorder %s22, 2
      // Predicated region
      $region33: #{tpu_custom_call.1} parent=5 // pred_check
        %p236 = pneg %p235
      $region34: #{tpu_custom_call.1} parent=5 // pred_check_branch
        %238 = sbr.rel (%p236) target = $region36
      $region35: #{tpu_custom_call.1} parent=5 // pred_region
        // Predicated region
        $region37: #{tpu_custom_call.1} parent=35 // pred_check
          %p239 = pneg %p42
        $region38: #{tpu_custom_call.1} parent=35 // pred_check_branch
          %241 = sbr.rel (%p239) target = $region40
        $region39: #{tpu_custom_call.1} parent=35 // pred_region
          %s242 = sand.u32 %s32, 1
          %s243 = scalar_lea.sflag [#allocation3], %s242
          %s244 = sand.u32 %s32, 1
          %s245 = smul.addr %s244, 32
          %s246 = scalar_lea.vmem [#allocation2], %s245
          %s247 = smul.u32 4, %s22
          %s249 = ssub.s32 512, 512
          %250 = vsyncadd %s243, %s249
          %s251 = smul.addr %s247, 128
          %s252 = scalar_lea.hbm %s0, %s251
          %s253 = sshll.u32 %s246, 4
          %s254 = int_to_ptr.vmem [resolvable:$true] %s253
          %259 = dma.hbm_to_vmem [thread:$0]  %s252, 512, %s254, %s243, 128, 128, 8
        $region40: #{tpu_custom_call.1} parent=35 // pred_fallthru
          _
        // Predicated region
        $region41: #{tpu_custom_call.1} parent=35 // pred_check
          %p260 = pneg %p68
        $region42: #{tpu_custom_call.1} parent=35 // pred_check_branch
          %262 = sbr.rel (%p260) target = $region44
        $region43: #{tpu_custom_call.1} parent=35 // pred_region
          %s263 = sand.u32 %s58, 1
          %s264 = scalar_lea.sflag [#allocation6], %s263
          %s265 = sand.u32 %s58, 1
          %s266 = smul.addr %s265, 32
          %s267 = scalar_lea.vmem [#allocation5], %s266
          %s268 = smul.u32 4, %s22
          %s270 = ssub.s32 512, 512
          %271 = vsyncadd %s264, %s270
          %s272 = smul.addr %s268, 128
          %s273 = scalar_lea.hbm %s1, %s272
          %s274 = sshll.u32 %s267, 4
          %s275 = int_to_ptr.vmem [resolvable:$true] %s274
          %280 = dma.hbm_to_vmem [thread:$0]  %s273, 512, %s275, %s264, 128, 128, 8
        $region44: #{tpu_custom_call.1} parent=35 // pred_fallthru
          _
      $region36: #{tpu_custom_call.1} parent=5 // pred_fallthru
        _
      %p281 = scmp.le.s32.totalorder 1, %s22
      %p282 = scmp.lt.s32.totalorder %s22, 3
      %p283 = pnand %p281, %p282
      %p284 = pneg %p283
      // Predicated region
      $region45: #{tpu_custom_call.1} parent=5 // pred_check
        _
      $region46: #{tpu_custom_call.1} parent=5 // pred_check_branch
        %286 = sbr.rel (%p283) target = $region48
      $region47: #{tpu_custom_call.1} parent=5 // pred_region
        %s287 = ssub.s32 %s22, 1
        %s288 = sand.u32 %s35, 1
        %s289 = scalar_lea.sflag [#allocation3], %s288
        %s290 = sand.u32 %s35, 1
        %s291 = smul.addr %s290, 32
        %s292 = scalar_lea.vmem [#allocation2], %s291
        // Predicated region
        $region49: #{tpu_custom_call.1} parent=47 // pred_check
          %p293 = pneg %p48
        $region50: #{tpu_custom_call.1} parent=47 // pred_check_branch
          %295 = sbr.rel (%p293) target = $region52
        $region51: #{tpu_custom_call.1} parent=47 // pred_region
          %296 = dma.done %s289, 512
        $region52: #{tpu_custom_call.1} parent=47 // pred_fallthru
          _
        %s297 = sand.u32 %s61, 1
        %s298 = scalar_lea.sflag [#allocation6], %s297
        %s299 = sand.u32 %s61, 1
        %s300 = smul.addr %s299, 32
        %s301 = scalar_lea.vmem [#allocation5], %s300
        // Predicated region
        $region53: #{tpu_custom_call.1} parent=47 // pred_check
          %p302 = pneg %p74
        $region54: #{tpu_custom_call.1} parent=47 // pred_check_branch
          %304 = sbr.rel (%p302) target = $region56
        $region55: #{tpu_custom_call.1} parent=47 // pred_region
          %305 = dma.done %s298, 512
        $region56: #{tpu_custom_call.1} parent=47 // pred_fallthru
          _
        %s306 = sand.u32 %s35, 1
        %s307 = scalar_lea.sflag [#allocation3], %s306
        %s308 = sand.u32 %s35, 1
        %s309 = smul.addr %s308, 32
        %s310 = scalar_lea.vmem [#allocation2], %s309
        %p311 = pneg %p48
        %p312 = pneg %p45
        %s313 = sand.u32 %s61, 1
        %s314 = scalar_lea.sflag [#allocation6], %s313
        %s315 = sand.u32 %s61, 1
        %s316 = smul.addr %s315, 32
        %s317 = scalar_lea.vmem [#allocation5], %s316
        %p318 = pneg %p74
        %p319 = pneg %p71
        %p320 = pneg %p95
        %p321 = pneg %p92
        %p322 = pneg %p116
        %p323 = pneg %p113
        %p324 = pneg %p137
        %p325 = pneg %p134
        %p326 = pneg %p158
        %p327 = pneg %p155
        %p328 = pneg %p179
        %p329 = pneg %p176
        %p330 = pneg %p205
        %p331 = pneg %p202
        %s332 = sand.u32 %s192, 1
        %s333 = scalar_lea.sflag [#allocation4], %s332
        %s334 = sand.u32 %s192, 1
        %s335 = smul.addr %s334, 64
        %s336 = scalar_lea.vmem [#allocation7], %s335
        %s337 = smul.u32 4, %s27
        %s338 = smul.u32 4, %s27
        %s339 = smul.u32 4, %s27
        %v341 = vld [vmem:[%s292] sm:$0xff]
        %v342 = vld [vmem:[%s292 + $0x8] sm:$0xff]
        %v343 = vld [vmem:[%s292 + $0x10] sm:$0xff]
        %v344 = vld [vmem:[%s292 + $0x18] sm:$0xff]
        %v345 = vld [vmem:[%s301] sm:$0xff]
        %v346 = vld [vmem:[%s301 + $0x8] sm:$0xff]
        %v347 = vld [vmem:[%s301 + $0x10] sm:$0xff]
        %v348 = vld [vmem:[%s301 + $0x18] sm:$0xff]
        %v349 = vadd.f32 %v341, %v345
        %v350 = vadd.f32 %v342, %v346
        %v351 = vadd.f32 %v343, %v347
        %v352 = vadd.f32 %v344, %v348
        %v353 = vld [vmem:[%s2] sm:$0xff]
        %v354 = vld [vmem:[%s2 + $0x8] sm:$0xff]
        %v355 = vld [vmem:[%s2 + $0x10] sm:$0xff]
        %v356 = vld [vmem:[%s2 + $0x18] sm:$0xff]
        %v357 = vld [vmem:[%s2 + $0x20] sm:$0xff]
        %v358 = vld [vmem:[%s2 + $0x28] sm:$0xff]
        %v359 = vld [vmem:[%s2 + $0x30] sm:$0xff]
        %v360 = vld [vmem:[%s2 + $0x38] sm:$0xff]
        %v361 = vld [vmem:[%s2 + $0x40] sm:$0xff]
        %v362 = vld [vmem:[%s2 + $0x48] sm:$0xff]
        %v363 = vld [vmem:[%s2 + $0x50] sm:$0xff]
        %v364 = vld [vmem:[%s2 + $0x58] sm:$0xff]
        %v365 = vld [vmem:[%s2 + $0x60] sm:$0xff]
        %v366 = vld [vmem:[%s2 + $0x68] sm:$0xff]
        %v367 = vld [vmem:[%s2 + $0x70] sm:$0xff]
        %v368 = vld [vmem:[%s2 + $0x78] sm:$0xff]
        %v369 = vld [vmem:[%s3] sm:$0x1]
        %v371 = vlaneseq
        %v372 = vshrl.u32 %v371, 7
        %v373 = vsub.s32 0, %v372
        %v374 = vrot.slane %v369, %v373
        %376 = vmatprep.subr.mxu0 0.0
        %377 = vmatpush1.msra.mxu0 %v353
        %378 = vmatprep.subr.mxu0 0.0
        %379 = vmatpush1.msra.mxu0 %v354
        %380 = vmatprep.subr.mxu0 0.0
        %381 = vmatpush1.msra.mxu0 %v355
        %382 = vmatprep.subr.mxu0 0.0
        %383 = vmatpush1.msra.mxu0 %v356
        %384 = vmatprep.subr.mxu0 0.0
        %385 = vmatpush1.msra.mxu0 %v357
        %386 = vmatprep.subr.mxu0 0.0
        %387 = vmatpush1.msra.mxu0 %v358
        %388 = vmatprep.subr.mxu0 0.0
        %389 = vmatpush1.msra.mxu0 %v359
        %390 = vmatprep.subr.mxu0 0.0
        %391 = vmatpush1.msra.mxu0 %v360
        %392 = vmatprep.subr.mxu0 0.0
        %393 = vmatpush1.msra.mxu0 %v361
        %394 = vmatprep.subr.mxu0 0.0
        %395 = vmatpush1.msra.mxu0 %v362
        %396 = vmatprep.subr.mxu0 0.0
        %397 = vmatpush1.msra.mxu0 %v363
        %398 = vmatprep.subr.mxu0 0.0
        %399 = vmatpush1.msra.mxu0 %v364
        %400 = vmatprep.subr.mxu0 0.0
        %401 = vmatpush1.msra.mxu0 %v365
        %402 = vmatprep.subr.mxu0 0.0
        %403 = vmatpush1.msra.mxu0 %v366
        %404 = vmatprep.subr.mxu0 0.0
        %405 = vmatpush1.msra.mxu0 %v367
        %406 = vmatprep.subr.mxu0 0.0
        %407 = vmatpush1.msra.mxu0 %v368
        %408 = vmatprep.subr.mxu0 0.0
        %409 = vmatpush1.msra.mxu0 0.0
        %410 = vmatprep.subr.mxu0 0.0
        %411 = vmatpush1.msra.mxu0 0.0
        %412 = vmatprep.subr.mxu0 0.0
        %413 = vmatpush1.msra.mxu0 0.0
        %414 = vmatprep.subr.mxu0 0.0
        %415 = vmatpush1.msra.mxu0 0.0
        %416 = vmatprep.subr.mxu0 0.0
        %417 = vmatpush1.msra.mxu0 0.0
        %418 = vmatprep.subr.mxu0 0.0
        %419 = vmatpush1.msra.mxu0 0.0
        %420 = vmatprep.subr.mxu0 0.0
        %421 = vmatpush1.msra.mxu0 0.0
        %422 = vmatprep.subr.mxu0 0.0
        %423 = vmatpush1.msra.mxu0 0.0
        %424 = vmatprep.subr.mxu0 0.0
        %425 = vmatpush1.msra.mxu0 0.0
        %426 = vmatprep.subr.mxu0 0.0
        %427 = vmatpush1.msra.mxu0 0.0
        %428 = vmatprep.subr.mxu0 0.0
        %429 = vmatpush1.msra.mxu0 0.0
        %430 = vmatprep.subr.mxu0 0.0
        %431 = vmatpush1.msra.mxu0 0.0
        %432 = vmatprep.subr.mxu0 0.0
        %433 = vmatpush1.msra.mxu0 0.0
        %434 = vmatprep.subr.mxu0 0.0
        %435 = vmatpush1.msra.mxu0 0.0
        %436 = vmatprep.subr.mxu0 0.0
        %437 = vmatpush1.msra.mxu0 0.0
        %438 = vmatprep.subr.mxu0 0.0
        %439 = vmatpush1.msra.mxu0 0.0
        %440 = vmatprep.mubr.f32.mxu0 0.0
        %441 = vmatmul.mubr.f32.gmra.mrb[0].mxu0 %v349
        %v442 = vpop.f32.mrb[0].mxu0
        %v443 = vadd.f32 %v374, %v442
        %v444 = vpop.f32.mrb[0].mxu0
        %445 = vmatprep.mubr.f32.mxu0 0.0
        %446 = vmatmul.mubr.f32.gmra.mrb[0].mxu0 %v350
        %v447 = vpop.f32.mrb[0].mxu0
        %v448 = vadd.f32 %v374, %v447
        %v449 = vpop.f32.mrb[0].mxu0
        %450 = vmatprep.mubr.f32.mxu0 0.0
        %451 = vmatmul.mubr.f32.gmra.mrb[0].mxu0 %v351
        %v452 = vpop.f32.mrb[0].mxu0
        %v453 = vadd.f32 %v374, %v452
        %v454 = vpop.f32.mrb[0].mxu0
        %455 = vmatprep.mubr.f32.mxu0 0.0
        %456 = vmatmul.mubr.f32.gmra.mrb[0].mxu0 %v352
        %v457 = vpop.f32.mrb[0].mxu0
        %v458 = vadd.f32 %v374, %v457
        %v459 = vpop.f32.mrb[0].mxu0
        %460 = vdwg.mxu0
        %v461 = vadd.f32 %v443, 3.0
        %v462 = vadd.f32 %v448, 3.0
        %v463 = vadd.f32 %v453, 3.0
        %v464 = vadd.f32 %v458, 3.0
        %v465 = vmax.f32 %v461, 0.0
        %v466 = vmax.f32 %v462, 0.0
        %v467 = vmax.f32 %v463, 0.0
        %v468 = vmax.f32 %v464, 0.0
        %v469 = vmin.f32 %v465, 6.0
        %v470 = vmin.f32 %v466, 6.0
        %v471 = vmin.f32 %v467, 6.0
        %v472 = vmin.f32 %v468, 6.0
        %v473 = vmul.f32 %v443, %v469
        %v474 = vmul.f32 %v448, %v470
        %v475 = vmul.f32 %v453, %v471
        %v476 = vmul.f32 %v458, %v472
        %v477 = vmul.f32 %v473, 0.16666667
        %v478 = vmul.f32 %v474, 0.16666667
        %v479 = vmul.f32 %v475, 0.16666667
        %v480 = vmul.f32 %v476, 0.16666667
        %v481 = vld [vmem:[%s4] sm:$0xff]
        %v482 = vld [vmem:[%s5] sm:$0x3]
        %v484 = vlaneseq
        %v485 = vshrl.u32 %v484, 7
        %v486 = vsub.s32 0, %v485
        %v487 = vrot.slane %v482, %v486
        %v488 = vlaneseq
        %v489 = vshrl.u32 %v488, 7
        %v490 = vsub.s32 1, %v489
        %v491 = vrot.slane %v482, %v490
        %v495 = vcombine.high %v481, %v481
        %vm496 = vcmask 31744
        %v498 = vsel %vm496, %v477, 0
        %v501 = vsel %vm496, %v478, 0
        %v504 = vsel %vm496, %v479, 0
        %v507 = vsel %vm496, %v480, 0
        %vm509 = vcmask 1043456
        %v510 = vsel %vm509, %v481, 0
        %v512 = vsel %vm509, %v495, 0
        %514 = vmatprep.subr.mxu0 %v512
        %515 = vmatpush1.msra.mxu0 %v510
        %516 = vmatprep.subr.mxu0 0.0
        %517 = vmatpush1.msra.mxu0 0.0
        %518 = vmatprep.subr.mxu0 0.0
        %519 = vmatpush1.msra.mxu0 0.0
        %520 = vmatprep.subr.mxu0 0.0
        %521 = vmatpush1.msra.mxu0 0.0
        %522 = vmatprep.subr.mxu0 0.0
        %523 = vmatpush1.msra.mxu0 0.0
        %524 = vmatprep.subr.mxu0 0.0
        %525 = vmatpush1.msra.mxu0 0.0
        %526 = vmatprep.subr.mxu0 0.0
        %527 = vmatpush1.msra.mxu0 0.0
        %528 = vmatprep.subr.mxu0 0.0
        %529 = vmatpush1.msra.mxu0 0.0
        %530 = vmatprep.subr.mxu0 0.0
        %531 = vmatpush1.msra.mxu0 0.0
        %532 = vmatprep.subr.mxu0 0.0
        %533 = vmatpush1.msra.mxu0 0.0
        %534 = vmatprep.subr.mxu0 0.0
        %535 = vmatpush1.msra.mxu0 0.0
        %536 = vmatprep.subr.mxu0 0.0
        %537 = vmatpush1.msra.mxu0 0.0
        %538 = vmatprep.subr.mxu0 0.0
        %539 = vmatpush1.msra.mxu0 0.0
        %540 = vmatprep.subr.mxu0 0.0
        %541 = vmatpush1.msra.mxu0 0.0
        %542 = vmatprep.subr.mxu0 0.0
        %543 = vmatpush1.msra.mxu0 0.0
        %544 = vmatprep.subr.mxu0 0.0
        %545 = vmatpush1.msra.mxu0 0.0
        %546 = vmatprep.subr.mxu0 0.0
        %547 = vmatpush1.msra.mxu0 0.0
        %548 = vmatprep.subr.mxu0 0.0
        %549 = vmatpush1.msra.mxu0 0.0
        %550 = vmatprep.subr.mxu0 0.0
        %551 = vmatpush1.msra.mxu0 0.0
        %552 = vmatprep.subr.mxu0 0.0
        %553 = vmatpush1.msra.mxu0 0.0
        %554 = vmatprep.subr.mxu0 0.0
        %555 = vmatpush1.msra.mxu0 0.0
        %556 = vmatprep.subr.mxu0 0.0
        %557 = vmatpush1.msra.mxu0 0.0
        %558 = vmatprep.subr.mxu0 0.0
        %559 = vmatpush1.msra.mxu0 0.0
        %560 = vmatprep.subr.mxu0 0.0
        %561 = vmatpush1.msra.mxu0 0.0
        %562 = vmatprep.subr.mxu0 0.0
        %563 = vmatpush1.msra.mxu0 0.0
        %564 = vmatprep.subr.mxu0 0.0
        %565 = vmatpush1.msra.mxu0 0.0
        %566 = vmatprep.subr.mxu0 0.0
        %567 = vmatpush1.msra.mxu0 0.0
        %568 = vmatprep.subr.mxu0 0.0
        %569 = vmatpush1.msra.mxu0 0.0
        %570 = vmatprep.subr.mxu0 0.0
        %571 = vmatpush1.msra.mxu0 0.0
        %572 = vmatprep.subr.mxu0 0.0
        %573 = vmatpush1.msra.mxu0 0.0
        %574 = vmatprep.subr.mxu0 0.0
        %575 = vmatpush1.msra.mxu0 0.0
        %576 = vmatprep.subr.mxu0 0.0
        %577 = vmatpush1.msra.mxu0 0.0
        %578 = vmatprep.mubr.f32.mxu0 0.0
        %579 = vmatmul.mubr.f32.gmra.mrb[0].mxu0 %v498
        %v580 = vpop.f32.mrb[0].mxu0
        %v581 = vadd.f32 %v487, %v580
        %v582 = vpop.f32.mrb[0].mxu0
        %v583 = vadd.f32 %v491, %v582
        %584 = vmatprep.mubr.f32.mxu0 0.0
        %585 = vmatmul.mubr.f32.gmra.mrb[0].mxu0 %v501
        %v586 = vpop.f32.mrb[0].mxu0
        %v587 = vadd.f32 %v487, %v586
        %v588 = vpop.f32.mrb[0].mxu0
        %v589 = vadd.f32 %v491, %v588
        %590 = vmatprep.mubr.f32.mxu0 0.0
        %591 = vmatmul.mubr.f32.gmra.mrb[0].mxu0 %v504
        %v592 = vpop.f32.mrb[0].mxu0
        %v593 = vadd.f32 %v487, %v592
        %v594 = vpop.f32.mrb[0].mxu0
        %v595 = vadd.f32 %v491, %v594
        %596 = vmatprep.mubr.f32.mxu0 0.0
        %597 = vmatmul.mubr.f32.gmra.mrb[0].mxu0 %v507
        %v598 = vpop.f32.mrb[0].mxu0
        %v599 = vadd.f32 %v487, %v598
        %v600 = vpop.f32.mrb[0].mxu0
        %v601 = vadd.f32 %v491, %v600
        %602 = vdwg.mxu0
        %v603 = vxor.u32 %v581, 2147483648
        %v604 = vxor.u32 %v583, 2147483648
        %v605 = vxor.u32 %v587, 2147483648
        %v606 = vxor.u32 %v589, 2147483648
        %v607 = vxor.u32 %v593, 2147483648
        %v608 = vxor.u32 %v595, 2147483648
        %v609 = vxor.u32 %v599, 2147483648
        %v610 = vxor.u32 %v601, 2147483648
        %v611 = vmul.f32 %v603, 1.442695
        %v612 = vpow.pop %v611
        %v613 = vmul.f32 %v604, 1.442695
        %v614 = vpow.pop %v613
        %v615 = vmul.f32 %v605, 1.442695
        %v616 = vpow.pop %v615
        %v617 = vmul.f32 %v606, 1.442695
        %v618 = vpow.pop %v617
        %v619 = vmul.f32 %v607, 1.442695
        %v620 = vpow.pop %v619
        %v621 = vmul.f32 %v608, 1.442695
        %v622 = vpow.pop %v621
        %v623 = vmul.f32 %v609, 1.442695
        %v624 = vpow.pop %v623
        %v625 = vmul.f32 %v610, 1.442695
        %v626 = vpow.pop %v625
        %v627 = vadd.f32 %v612, 1.0
        %v628 = vadd.f32 %v614, 1.0
        %v629 = vadd.f32 %v616, 1.0
        %v630 = vadd.f32 %v618, 1.0
        %v631 = vadd.f32 %v620, 1.0
        %v632 = vadd.f32 %v622, 1.0
        %v633 = vadd.f32 %v624, 1.0
        %v634 = vadd.f32 %v626, 1.0
        %v635 = vrcp.pop %v627
        %v636 = vmul.f32 1.0, %v635
        %v637 = vrcp.pop %v628
        %v638 = vmul.f32 1.0, %v637
        %v639 = vrcp.pop %v629
        %v640 = vmul.f32 1.0, %v639
        %v641 = vrcp.pop %v630
        %v642 = vmul.f32 1.0, %v641
        %v643 = vrcp.pop %v631
        %v644 = vmul.f32 1.0, %v643
        %v645 = vrcp.pop %v632
        %v646 = vmul.f32 1.0, %v645
        %v647 = vrcp.pop %v633
        %v648 = vmul.f32 1.0, %v647
        %v649 = vrcp.pop %v634
        %v650 = vmul.f32 1.0, %v649
        %v651 = vld [vmem:[%s6] sm:$0xff]
        %v652 = vld [vmem:[%s6 + $0x8] sm:$0xff]
        %v653 = vld [vmem:[%s6 + $0x10] sm:$0xff]
        %v654 = vld [vmem:[%s6 + $0x18] sm:$0xff]
        %v655 = vld [vmem:[%s6 + $0x20] sm:$0xff]
        %v656 = vld [vmem:[%s6 + $0x28] sm:$0xff]
        %v657 = vld [vmem:[%s6 + $0x30] sm:$0xff]
        %v658 = vld [vmem:[%s6 + $0x38] sm:$0xff]
        %v659 = vld [vmem:[%s6 + $0x40] sm:$0xff]
        %v660 = vld [vmem:[%s6 + $0x48] sm:$0xff]
        %v661 = vld [vmem:[%s6 + $0x50] sm:$0xff]
        %v662 = vld [vmem:[%s6 + $0x58] sm:$0xff]
        %v663 = vld [vmem:[%s6 + $0x60] sm:$0xff]
        %v664 = vld [vmem:[%s6 + $0x68] sm:$0xff]
        %v665 = vld [vmem:[%s6 + $0x70] sm:$0xff]
        %v666 = vld [vmem:[%s6 + $0x78] sm:$0xff]
        %v667 = vpack.c.bf16 %v342, %v341
        %v668 = vpack.c.bf16 %v344, %v343
        %v669 = vunpack.c.l.bf16 %v667
        %v670 = vunpack.c.h.bf16 %v667
        %v671 = vunpack.c.l.bf16 %v668
        %v672 = vunpack.c.h.bf16 %v668
        %v673 = vsub.f32 %v341, %v669
        %v674 = vsub.f32 %v342, %v670
        %v675 = vsub.f32 %v343, %v671
        %v676 = vsub.f32 %v344, %v672
        %v677 = vpack.c.bf16 %v674, %v673
        %v678 = vpack.c.bf16 %v676, %v675
        %v695 = vunpack.c.l.b16 %v651
        %v696 = vunpack.c.h.b16 %v651
        %v697 = vunpack.c.l.b16 %v652
        %v698 = vunpack.c.h.b16 %v652
        %v699 = vunpack.c.l.b16 %v653
        %v700 = vunpack.c.h.b16 %v653
        %v701 = vunpack.c.l.b16 %v654
        %v702 = vunpack.c.h.b16 %v654
        %v703 = vunpack.c.l.b16 %v655
        %v704 = vunpack.c.h.b16 %v655
        %v705 = vunpack.c.l.b16 %v656
        %v706 = vunpack.c.h.b16 %v656
        %v707 = vunpack.c.l.b16 %v657
        %v708 = vunpack.c.h.b16 %v657
        %v709 = vunpack.c.l.b16 %v658
        %v710 = vunpack.c.h.b16 %v658
        %v711 = vunpack.c.l.b16 %v659
        %v712 = vunpack.c.h.b16 %v659
        %v713 = vunpack.c.l.b16 %v660
        %v714 = vunpack.c.h.b16 %v660
        %v715 = vunpack.c.l.b16 %v661
        %v716 = vunpack.c.h.b16 %v661
        %v717 = vunpack.c.l.b16 %v662
        %v718 = vunpack.c.h.b16 %v662
        %v719 = vunpack.c.l.b16 %v663
        %v720 = vunpack.c.h.b16 %v663
        %v721 = vunpack.c.l.b16 %v664
        %v722 = vunpack.c.h.b16 %v664
        %v723 = vunpack.c.l.b16 %v665
        %v724 = vunpack.c.h.b16 %v665
        %v725 = vunpack.c.l.b16 %v666
        %v726 = vunpack.c.h.b16 %v666
        %v727 = vpack.c.b16 %v697, %v695
        %v728 = vpack.c.b16 %v698, %v696
        %v729 = vpack.c.b16 %v701, %v699
        %v730 = vpack.c.b16 %v702, %v700
        %v731 = vpack.c.b16 %v705, %v703
        %v732 = vpack.c.b16 %v706, %v704
        %v733 = vpack.c.b16 %v709, %v707
        %v734 = vpack.c.b16 %v710, %v708
        %v735 = vpack.c.b16 %v713, %v711
        %v736 = vpack.c.b16 %v714, %v712
        %v737 = vpack.c.b16 %v717, %v715
        %v738 = vpack.c.b16 %v718, %v716
        %v739 = vpack.c.b16 %v721, %v719
        %v740 = vpack.c.b16 %v722, %v720
        %v741 = vpack.c.b16 %v725, %v723
        %v742 = vpack.c.b16 %v726, %v724
        %759 = vmatprep.subr.bf16.mxu0 %v728
        %760 = vmatpush1.bf16.msra.mxu0 %v727
        %761 = vmatprep.subr.bf16.mxu0 %v730
        %762 = vmatpush1.bf16.msra.mxu0 %v729
        %763 = vmatprep.subr.bf16.mxu0 %v732
        %764 = vmatpush1.bf16.msra.mxu0 %v731
        %765 = vmatprep.subr.bf16.mxu0 %v734
        %766 = vmatpush1.bf16.msra.mxu0 %v733
        %767 = vmatprep.subr.bf16.mxu0 %v736
        %768 = vmatpush1.bf16.msra.mxu0 %v735
        %769 = vmatprep.subr.bf16.mxu0 %v738
        %770 = vmatpush1.bf16.msra.mxu0 %v737
        %771 = vmatprep.subr.bf16.mxu0 %v740
        %772 = vmatpush1.bf16.msra.mxu0 %v739
        %773 = vmatprep.subr.bf16.mxu0 %v742
        %774 = vmatpush1.bf16.msra.mxu0 %v741
        %775 = vmatprep.subr.bf16.mxu0 0
        %776 = vmatpush1.bf16.msra.mxu0 0
        %777 = vmatprep.subr.bf16.mxu0 0
        %778 = vmatpush1.bf16.msra.mxu0 0
        %779 = vmatprep.subr.bf16.mxu0 0
        %780 = vmatpush1.bf16.msra.mxu0 0
        %781 = vmatprep.subr.bf16.mxu0 0
        %782 = vmatpush1.bf16.msra.mxu0 0
        %783 = vmatprep.subr.bf16.mxu0 0
        %784 = vmatpush1.bf16.msra.mxu0 0
        %785 = vmatprep.subr.bf16.mxu0 0
        %786 = vmatpush1.bf16.msra.mxu0 0
        %787 = vmatprep.subr.bf16.mxu0 0
        %788 = vmatpush1.bf16.msra.mxu0 0
        %789 = vmatprep.subr.bf16.mxu0 0
        %790 = vmatpush1.bf16.msra.mxu0 0
        %791 = vmatprep.mubr.bf16.mxu0 0
        %792 = vmatmul.mubr.bf16.gmra.mrb[0].mxu0 %v677
        %v793 = vpop.f32.mrb[0].mxu0
        %v794 = vadd.f32 0.0, %v793
        %v795 = vpop.f32.mrb[0].mxu0
        %v796 = vadd.f32 0.0, %v795
        %v797 = vpop.f32.mrb[0].mxu0
        %v798 = vadd.f32 0.0, %v797
        %v799 = vpop.f32.mrb[0].mxu0
        %v800 = vadd.f32 0.0, %v799
        %801 = vmatprep.mubr.bf16.mxu0 0
        %802 = vmatmul.mubr.bf16.gmra.mrb[0].mxu0 %v678
        %v803 = vpop.f32.mrb[0].mxu0
        %v804 = vadd.f32 0.0, %v803
        %v805 = vpop.f32.mrb[0].mxu0
        %v806 = vadd.f32 0.0, %v805
        %v807 = vpop.f32.mrb[0].mxu0
        %v808 = vadd.f32 0.0, %v807
        %v809 = vpop.f32.mrb[0].mxu0
        %v810 = vadd.f32 0.0, %v809
        %811 = vdwg.mxu0
        %812 = vmatprep.subr.bf16.mxu0 %v728
        %813 = vmatpush1.bf16.msra.mxu0 %v727
        %814 = vmatprep.subr.bf16.mxu0 %v730
        %815 = vmatpush1.bf16.msra.mxu0 %v729
        %816 = vmatprep.subr.bf16.mxu0 %v732
        %817 = vmatpush1.bf16.msra.mxu0 %v731
        %818 = vmatprep.subr.bf16.mxu0 %v734
        %819 = vmatpush1.bf16.msra.mxu0 %v733
        %820 = vmatprep.subr.bf16.mxu0 %v736
        %821 = vmatpush1.bf16.msra.mxu0 %v735
        %822 = vmatprep.subr.bf16.mxu0 %v738
        %823 = vmatpush1.bf16.msra.mxu0 %v737
        %824 = vmatprep.subr.bf16.mxu0 %v740
        %825 = vmatpush1.bf16.msra.mxu0 %v739
        %826 = vmatprep.subr.bf16.mxu0 %v742
        %827 = vmatpush1.bf16.msra.mxu0 %v741
        %828 = vmatprep.subr.bf16.mxu0 0
        %829 = vmatpush1.bf16.msra.mxu0 0
        %830 = vmatprep.subr.bf16.mxu0 0
        %831 = vmatpush1.bf16.msra.mxu0 0
        %832 = vmatprep.subr.bf16.mxu0 0
        %833 = vmatpush1.bf16.msra.mxu0 0
        %834 = vmatprep.subr.bf16.mxu0 0
        %835 = vmatpush1.bf16.msra.mxu0 0
        %836 = vmatprep.subr.bf16.mxu0 0
        %837 = vmatpush1.bf16.msra.mxu0 0
        %838 = vmatprep.subr.bf16.mxu0 0
        %839 = vmatpush1.bf16.msra.mxu0 0
        %840 = vmatprep.subr.bf16.mxu0 0
        %841 = vmatpush1.bf16.msra.mxu0 0
        %842 = vmatprep.subr.bf16.mxu0 0
        %843 = vmatpush1.bf16.msra.mxu0 0
        %844 = vmatprep.mubr.bf16.mxu0 0
        %845 = vmatmul.mubr.bf16.gmra.mrb[0].mxu0 %v667
        %v846 = vpop.f32.mrb[0].mxu0
        %v847 = vadd.f32 %v794, %v846
        %v848 = vpop.f32.mrb[0].mxu0
        %v849 = vadd.f32 %v796, %v848
        %v850 = vpop.f32.mrb[0].mxu0
        %v851 = vadd.f32 %v798, %v850
        %v852 = vpop.f32.mrb[0].mxu0
        %v853 = vadd.f32 %v800, %v852
        %854 = vmatprep.mubr.bf16.mxu0 0
        %855 = vmatmul.mubr.bf16.gmra.mrb[0].mxu0 %v668
        %v856 = vpop.f32.mrb[0].mxu0
        %v857 = vadd.f32 %v804, %v856
        %v858 = vpop.f32.mrb[0].mxu0
        %v859 = vadd.f32 %v806, %v858
        %v860 = vpop.f32.mrb[0].mxu0
        %v861 = vadd.f32 %v808, %v860
        %v862 = vpop.f32.mrb[0].mxu0
        %v863 = vadd.f32 %v810, %v862
        %864 = vdwg.mxu0
        %v865 = vpack.c.bf16 %v346, %v345
        %v866 = vpack.c.bf16 %v348, %v347
        %v867 = vunpack.c.l.bf16 %v865
        %v868 = vunpack.c.h.bf16 %v865
        %v869 = vunpack.c.l.bf16 %v866
        %v870 = vunpack.c.h.bf16 %v866
        %v871 = vsub.f32 %v345, %v867
        %v872 = vsub.f32 %v346, %v868
        %v873 = vsub.f32 %v347, %v869
        %v874 = vsub.f32 %v348, %v870
        %v875 = vpack.c.bf16 %v872, %v871
        %v876 = vpack.c.bf16 %v874, %v873
        %877 = vmatprep.subr.bf16.mxu0 %v728
        %878 = vmatpush1.bf16.msra.mxu0 %v727
        %879 = vmatprep.subr.bf16.mxu0 %v730
        %880 = vmatpush1.bf16.msra.mxu0 %v729
        %881 = vmatprep.subr.bf16.mxu0 %v732
        %882 = vmatpush1.bf16.msra.mxu0 %v731
        %883 = vmatprep.subr.bf16.mxu0 %v734
        %884 = vmatpush1.bf16.msra.mxu0 %v733
        %885 = vmatprep.subr.bf16.mxu0 %v736
        %886 = vmatpush1.bf16.msra.mxu0 %v735
        %887 = vmatprep.subr.bf16.mxu0 %v738
        %888 = vmatpush1.bf16.msra.mxu0 %v737
        %889 = vmatprep.subr.bf16.mxu0 %v740
        %890 = vmatpush1.bf16.msra.mxu0 %v739
        %891 = vmatprep.subr.bf16.mxu0 %v742
        %892 = vmatpush1.bf16.msra.mxu0 %v741
        %893 = vmatprep.subr.bf16.mxu0 0
        %894 = vmatpush1.bf16.msra.mxu0 0
        %895 = vmatprep.subr.bf16.mxu0 0
        %896 = vmatpush1.bf16.msra.mxu0 0
        %897 = vmatprep.subr.bf16.mxu0 0
        %898 = vmatpush1.bf16.msra.mxu0 0
        %899 = vmatprep.subr.bf16.mxu0 0
        %900 = vmatpush1.bf16.msra.mxu0 0
        %901 = vmatprep.subr.bf16.mxu0 0
        %902 = vmatpush1.bf16.msra.mxu0 0
        %903 = vmatprep.subr.bf16.mxu0 0
        %904 = vmatpush1.bf16.msra.mxu0 0
        %905 = vmatprep.subr.bf16.mxu0 0
        %906 = vmatpush1.bf16.msra.mxu0 0
        %907 = vmatprep.subr.bf16.mxu0 0
        %908 = vmatpush1.bf16.msra.mxu0 0
        %909 = vmatprep.mubr.bf16.mxu0 0
        %910 = vmatmul.mubr.bf16.gmra.mrb[0].mxu0 %v875
        %v911 = vpop.f32.mrb[0].mxu0
        %v912 = vadd.f32 0.0, %v911
        %v913 = vpop.f32.mrb[0].mxu0
        %v914 = vadd.f32 0.0, %v913
        %v915 = vpop.f32.mrb[0].mxu0
        %v916 = vadd.f32 0.0, %v915
        %v917 = vpop.f32.mrb[0].mxu0
        %v918 = vadd.f32 0.0, %v917
        %919 = vmatprep.mubr.bf16.mxu0 0
        %920 = vmatmul.mubr.bf16.gmra.mrb[0].mxu0 %v876
        %v921 = vpop.f32.mrb[0].mxu0
        %v922 = vadd.f32 0.0, %v921
        %v923 = vpop.f32.mrb[0].mxu0
        %v924 = vadd.f32 0.0, %v923
        %v925 = vpop.f32.mrb[0].mxu0
        %v926 = vadd.f32 0.0, %v925
        %v927 = vpop.f32.mrb[0].mxu0
        %v928 = vadd.f32 0.0, %v927
        %929 = vdwg.mxu0
        %930 = vmatprep.subr.bf16.mxu0 %v728
        %931 = vmatpush1.bf16.msra.mxu0 %v727
        %932 = vmatprep.subr.bf16.mxu0 %v730
        %933 = vmatpush1.bf16.msra.mxu0 %v729
        %934 = vmatprep.subr.bf16.mxu0 %v732
        %935 = vmatpush1.bf16.msra.mxu0 %v731
        %936 = vmatprep.subr.bf16.mxu0 %v734
        %937 = vmatpush1.bf16.msra.mxu0 %v733
        %938 = vmatprep.subr.bf16.mxu0 %v736
        %939 = vmatpush1.bf16.msra.mxu0 %v735
        %940 = vmatprep.subr.bf16.mxu0 %v738
        %941 = vmatpush1.bf16.msra.mxu0 %v737
        %942 = vmatprep.subr.bf16.mxu0 %v740
        %943 = vmatpush1.bf16.msra.mxu0 %v739
        %944 = vmatprep.subr.bf16.mxu0 %v742
        %945 = vmatpush1.bf16.msra.mxu0 %v741
        %946 = vmatprep.subr.bf16.mxu0 0
        %947 = vmatpush1.bf16.msra.mxu0 0
        %948 = vmatprep.subr.bf16.mxu0 0
        %949 = vmatpush1.bf16.msra.mxu0 0
        %950 = vmatprep.subr.bf16.mxu0 0
        %951 = vmatpush1.bf16.msra.mxu0 0
        %952 = vmatprep.subr.bf16.mxu0 0
        %953 = vmatpush1.bf16.msra.mxu0 0
        %954 = vmatprep.subr.bf16.mxu0 0
        %955 = vmatpush1.bf16.msra.mxu0 0
        %956 = vmatprep.subr.bf16.mxu0 0
        %957 = vmatpush1.bf16.msra.mxu0 0
        %958 = vmatprep.subr.bf16.mxu0 0
        %959 = vmatpush1.bf16.msra.mxu0 0
        %960 = vmatprep.subr.bf16.mxu0 0
        %961 = vmatpush1.bf16.msra.mxu0 0
        %962 = vmatprep.mubr.bf16.mxu0 0
        %963 = vmatmul.mubr.bf16.gmra.mrb[0].mxu0 %v865
        %v964 = vpop.f32.mrb[0].mxu0
        %v965 = vadd.f32 %v912, %v964
        %v966 = vpop.f32.mrb[0].mxu0
        %v967 = vadd.f32 %v914, %v966
        %v968 = vpop.f32.mrb[0].mxu0
        %v969 = vadd.f32 %v916, %v968
        %v970 = vpop.f32.mrb[0].mxu0
        %v971 = vadd.f32 %v918, %v970
        %972 = vmatprep.mubr.bf16.mxu0 0
        %973 = vmatmul.mubr.bf16.gmra.mrb[0].mxu0 %v866
        %v974 = vpop.f32.mrb[0].mxu0
        %v975 = vadd.f32 %v922, %v974
        %v976 = vpop.f32.mrb[0].mxu0
        %v977 = vadd.f32 %v924, %v976
        %v978 = vpop.f32.mrb[0].mxu0
        %v979 = vadd.f32 %v926, %v978
        %v980 = vpop.f32.mrb[0].mxu0
        %v981 = vadd.f32 %v928, %v980
        %982 = vdwg.mxu0
        %v983 = vmul.f32 %v636, %v847
        %v984 = vmul.f32 %v638, %v849
        %v985 = vmul.f32 %v640, %v851
        %v986 = vmul.f32 %v642, %v853
        %v987 = vmul.f32 %v644, %v857
        %v988 = vmul.f32 %v646, %v859
        %v989 = vmul.f32 %v648, %v861
        %v990 = vmul.f32 %v650, %v863
        %v991 = vadd.f32 %v965, %v983
        %v992 = vadd.f32 %v967, %v984
        %v993 = vadd.f32 %v969, %v985
        %v994 = vadd.f32 %v971, %v986
        %v995 = vadd.f32 %v975, %v987
        %v996 = vadd.f32 %v977, %v988
        %v997 = vadd.f32 %v979, %v989
        %v998 = vadd.f32 %v981, %v990
        %v999 = vmul.f32 %v991, 2.0
        %v1000 = vmul.f32 %v992, 2.0
        %v1001 = vmul.f32 %v993, 2.0
        %v1002 = vmul.f32 %v994, 2.0
        %v1003 = vmul.f32 %v995, 2.0
        %v1004 = vmul.f32 %v996, 2.0
        %v1005 = vmul.f32 %v997, 2.0
        %v1006 = vmul.f32 %v998, 2.0
        %1007 = vst [vmem:[%s336] sm:$0xff] %v999
        %1008 = vst [vmem:[%s336 + $0x8] sm:$0xff] %v1000
        %1009 = vst [vmem:[%s336 + $0x10] sm:$0xff] %v1001
        %1010 = vst [vmem:[%s336 + $0x18] sm:$0xff] %v1002
        %1011 = vst [vmem:[%s336 + $0x20] sm:$0xff] %v1003
        %1012 = vst [vmem:[%s336 + $0x28] sm:$0xff] %v1004
        %1013 = vst [vmem:[%s336 + $0x30] sm:$0xff] %v1005
        %1014 = vst [vmem:[%s336 + $0x38] sm:$0xff] %v1006
        %s1015 = sand.u32 %s192, 1
        %s1016 = scalar_lea.sflag [#allocation4], %s1015
        %s1017 = sand.u32 %s192, 1
        %s1018 = smul.addr %s1017, 64
        %s1019 = scalar_lea.vmem [#allocation7], %s1018
        // Predicated region
        $region57: #{tpu_custom_call.1} parent=47 // pred_check
          %p1020 = pneg %p202
        $region58: #{tpu_custom_call.1} parent=47 // pred_check_branch
          %1022 = sbr.rel (%p1020) target = $region60
        $region59: #{tpu_custom_call.1} parent=47 // pred_region
          %s1023 = smul.u32 4, %s27
          %s1025 = ssub.s32 1024, 1024
          %1026 = vsyncadd %s1016, %s1025
          %s1027 = smul.addr %s1023, 2
          %s1028 = smul.addr %s1027, 128
          %s1029 = scalar_lea.hbm %s7, %s1028
          %s1030 = sshll.u32 %s1019, 4
          %s1031 = int_to_ptr.vmem [resolvable:$true] %s1030
          %1036 = dma.vmem_to_hbm [thread:$0]  %s1031, 1024, %s1029, %s1016, 256, 256, 16
        $region60: #{tpu_custom_call.1} parent=47 // pred_fallthru
          _
      $region48: #{tpu_custom_call.1} parent=5 // pred_fallthru
        _
      %p1037 = scmp.le.s32.totalorder 2, %s22
      // Predicated region
      $region61: #{tpu_custom_call.1} parent=5 // pred_check
        %p1038 = pneg %p1037
      $region62: #{tpu_custom_call.1} parent=5 // pred_check_branch
        %1040 = sbr.rel (%p1038) target = $region64
      $region63: #{tpu_custom_call.1} parent=5 // pred_region
        %s1041 = ssub.s32 %s22, 2
        // Predicated region
        $region65: #{tpu_custom_call.1} parent=63 // pred_check
          %p1042 = pneg %p208
        $region66: #{tpu_custom_call.1} parent=63 // pred_check_branch
          %1044 = sbr.rel (%p1042) target = $region68
        $region67: #{tpu_custom_call.1} parent=63 // pred_region
          %s1045 = sand.u32 %s193, 1
          %s1046 = scalar_lea.sflag [#allocation4], %s1045
          %s1047 = sand.u32 %s193, 1
          %s1048 = smul.addr %s1047, 64
          %s1049 = scalar_lea.vmem [#allocation7], %s1048
          %1050 = dma.done %s1046, 1024
        $region68: #{tpu_custom_call.1} parent=63 // pred_fallthru
          _
      $region64: #{tpu_custom_call.1} parent=5 // pred_fallthru
        _
    $region6: #{tpu_custom_call.1} parent=1 // loop_footer
      %s26 = sadd.s32 1, %s22
    $region7: #{tpu_custom_call.1} parent=1 // loop_footer_branch
      %21 = sbr.rel target = $region3
    $region8: #{tpu_custom_call.1} parent=1 // loop_exit
      _
    %1051 = vsyncpa [#allocation3], 1
    %s1052 = scalar_lea.sflag [#allocation3], 1
    %1053 = vsyncpa %s1052, 1
    %1054 = vsyncpa [#allocation6], 1
    %s1055 = scalar_lea.sflag [#allocation6], 1
    %1056 = vsyncpa %s1055, 1
    %1057 = vsyncpa [#allocation4], 1
    %s1058 = scalar_lea.sflag [#allocation4], 1
    %1059 = vsyncpa %s1058, 1

</llo_original>
